<compile_context>
chip_gen: v7x
topology: tpu7x:2x2x1
jax: 0.10.0
libtpu: 0.0.40
codegen_flags: <defaults>
</compile_context>

<pallas_src>
import inspect

import jax
import jax.numpy as jnp
from jax.experimental import pallas as pl
from jax.experimental.pallas import tpu as pltpu


_SMALL_PROBLEM_LIMIT = 1 << 21   # M*K*N below this -> plain XLA dot fallback
_WRES_W_BYTES_LIMIT = 16 << 20   # bf16 weight must fit well inside VMEM
_VMEM_CAP = 48 << 20             # stay comfortably under v7x's 64 MiB VMEM


def _round_up(x, m):
    return ((x + m - 1) // m) * m


def _pick_tile(padded_dim, max_tile=512):
    """padded_dim is a multiple of 128; pick the largest tile that divides it
    exactly (prefers 512/256 so the 2x256^2 MXU on v6e/v7x stays full)."""
    for t in (512, 384, 256, 128):
        if t <= max_tile and padded_dim % t == 0:
            return t
    return min(padded_dim, max_tile)


# ----------------------------------------------------------------------------
# Kernel 1: W-resident linear.  Whole bf16 W and f32 bias live in VMEM
# (constant index_map -> fetched once); grid streams M stripes of x.
# ----------------------------------------------------------------------------
def _linear_kernel_wres(x_ref, w_ref, b_ref, o_ref):
    o_ref[...] = (
        jnp.dot(x_ref[...], w_ref[...], preferred_element_type=jnp.float32)
        + b_ref[...]
    )


# ----------------------------------------------------------------------------
# Kernel 2: general (M, N, K) tiled linear; K innermost ("arbitrary").
# Accumulates directly into the resident f32 output block -- no VMEM scratch.
# ----------------------------------------------------------------------------
def _linear_kernel_tiled(x_ref, w_ref, b_ref, o_ref):
    k = pl.program_id(2)

    @pl.when(k == 0)
    def _():
        o_ref[...] = jnp.zeros_like(o_ref)

    # bf16 x bf16 -> f32 accumulate on the MXU, straight into the output block.
    o_ref[...] += jnp.dot(x_ref[...], w_ref[...],
                          preferred_element_type=jnp.float32)

    @pl.when(k == pl.num_programs(2) - 1)
    def _():
        o_ref[...] += b_ref[...]   # bias added once, in f32


def pallas_linear(x_2d, w_p, b_p, n_valid, *, tm_max=512, force_tiled=False):
    """Compute x_2d @ w_p[:K, :] + b_p, returning [M, n_valid] float32.

    x_2d:  [M, K]  activations (any float dtype; cast to bf16 at the boundary)
    w_p:   [Kp, Np] bf16 weight, already transposed and zero-padded to
           128-multiples (cached once in the module, not per call)
    b_p:   [1, Np]  f32 bias row, zero-padded
    """
    M, K = x_2d.shape
    Kp, Np = w_p.shape

    # ---- M tile: as large as possible, 16-aligned for bf16 sublanes --------
    tm = min(tm_max, _round_up(M, 16))
    # v7x megacore: if M is large enough, prefer >= 2 M blocks so both
    # TensorCores get work even when N fits in a single tile.
    if M > 256 and _round_up(M, tm) // tm < 2:
        tm = _round_up((M + 1) // 2, 16)

    w_bytes = Kp * Np * 2

    def _wres_vmem(t):
        # x / out stripes double-buffered; count W + bias twice for headroom.
        return 2 * (w_bytes + t * Kp * 2 + t * Np * 4 + Np * 4)

    use_wres = (not force_tiled) and (w_bytes <= _WRES_W_BYTES_LIMIT)
    if use_wres:
        while tm > 16 and _wres_vmem(tm) > _VMEM_CAP:
            tm = max(16, _round_up(tm // 2, 16))
        use_wres = _wres_vmem(tm) <= _VMEM_CAP

    Mp = _round_up(M, tm)

    # ---- x: cast to bf16 first (halves pad traffic), pad only if needed ----
    x_bf = x_2d.astype(jnp.bfloat16)
    if (Mp, Kp) != (M, K):
        x_bf = jnp.pad(x_bf, ((0, Mp - M), (0, Kp - K)))

    if use_wres:
        # ------------------ W-resident path: grid over M only ---------------
        vmem_limit = int(min(_VMEM_CAP, max(_wres_vmem(tm) + (4 << 20), 8 << 20)))
        cost = pl.CostEstimate(
            flops=2 * Mp * Np * Kp,
            transcendentals=0,
            bytes_accessed=int(Mp * Kp * 2 + w_bytes + Np * 4 + Mp * Np * 4),
        )
        out_p = pl.pallas_call(
            _linear_kernel_wres,
            out_shape=jax.ShapeDtypeStruct((Mp, Np), jnp.float32),
            grid_spec=pltpu.PrefetchScalarGridSpec(
                num_scalar_prefetch=0,
                grid=(Mp // tm,),
                in_specs=[
                    pl.BlockSpec((tm, Kp), lambda i: (i, 0)),   # x stripe
                    pl.BlockSpec((Kp, Np), lambda i: (0, 0)),   # whole W, once
                    pl.BlockSpec((1, Np), lambda i: (0, 0)),    # bias row, once
                ],
                out_specs=pl.BlockSpec((tm, Np), lambda i: (i, 0)),
            ),
            compiler_params=pltpu.CompilerParams(
                dimension_semantics=("parallel",),
                vmem_limit_bytes=vmem_limit,
            ),
            cost_estimate=cost,
        )(x_bf, w_p, b_p)
    else:
        # ------------------ general tiled (M, N, K) path --------------------
        tn = _pick_tile(Np)
        tk = _pick_tile(Kp)
        grid = (Mp // tm, Np // tn, Kp // tk)

        vmem_est = 2 * ((tm * tk + tk * tn) * 2 + tn * 4) + 2 * tm * tn * 4
        vmem_limit = int(min(_VMEM_CAP, max(2 * vmem_est, 8 << 20)))
        cost = pl.CostEstimate(
            flops=2 * Mp * Np * Kp,
            transcendentals=0,
            # account for tile re-reads: x once per N block, W once per M block
            bytes_accessed=int(Mp * Kp * 2 * grid[1] + w_bytes * grid[0]
                               + Np * 4 * grid[0] + Mp * Np * 4),
        )
        out_p = pl.pallas_call(
            _linear_kernel_tiled,
            out_shape=jax.ShapeDtypeStruct((Mp, Np), jnp.float32),
            grid_spec=pltpu.PrefetchScalarGridSpec(
                num_scalar_prefetch=0,
                grid=grid,
                in_specs=[
                    pl.BlockSpec((tm, tk), lambda i, j, k: (i, k)),   # x tile
                    pl.BlockSpec((tk, tn), lambda i, j, k: (k, j)),   # W tile
                    pl.BlockSpec((1, tn), lambda i, j, k: (0, j)),    # bias tile
                ],
                out_specs=pl.BlockSpec((tm, tn), lambda i, j, k: (i, j)),
            ),
            compiler_params=pltpu.CompilerParams(
                dimension_semantics=("parallel", "parallel", "arbitrary"),
                vmem_limit_bytes=vmem_limit,
            ),
            cost_estimate=cost,
        )(x_bf, w_p, b_p)

    # Skip the (memory-bound) slice entirely when already aligned.
    if (Mp, Np) != (M, n_valid):
        out_p = out_p[:M, :n_valid]
    return out_p


# ----------------------------------------------------------------------------
# Wrapped "module": a Linear whose hot path is the Pallas kernel.
# Parameters initialized deterministically in-script (no checkpoint loading).
# ----------------------------------------------------------------------------
class PallasLinearModule:
    def __init__(self, d_in, d_out, key):
        kw, kb = jax.random.split(key)
        bound = 1.0 / (d_in ** 0.5)
        # PyTorch nn.Linear stores weight [d_out, d_in]; keep f32 master copy.
        self.weight = jax.random.uniform(kw, (d_out, d_in), jnp.float32,
                                         minval=-bound, maxval=bound)
        self.bias = jax.random.uniform(kb, (d_out,), jnp.float32,
                                       minval=-bound, maxval=bound)
        self.d_in, self.d_out = d_in, d_out
        # Pad + bf16-cast ONCE (not per forward): pre-transposed bf16 [Kp, Np]
        # weight and padded f32 bias row, both 128-aligned.
        Kp, Np = _round_up(d_in, 128), _round_up(d_out, 128)
        self._w_p = jnp.pad(jnp.asarray(self.weight).T.astype(jnp.bfloat16),
                            ((0, Kp - d_in), (0, Np - d_out)))
        self._b_p = jnp.pad(jnp.asarray(self.bias, jnp.float32)[None, :],
                            ((0, 0), (0, Np - d_out)))

    def forward(self, x):
        # x: [B, S, D_in] -> [B, S, D_out]
        B, S, D = x.shape
        M = B * S
        x2d = x.reshape(M, D)
        if M * self.d_in * self.d_out <= _SMALL_PROBLEM_LIMIT:
            # Tiny problem: pad + pallas launch overhead dwarfs the matmul.
            y2d = x2d @ self.weight.T + self.bias
        else:
            y2d = pallas_linear(x2d, self._w_p, self._b_p, self.d_out)
        return y2d.reshape(B, S, self.d_out)

    def __call__(self, *args, **kwargs):
        return self.forward(*args, **kwargs)


# ----------------------------------------------------------------------------
# DataRouter / RoutableMixin routing semantics (route_unfiltered on forward):
#  - resolve each input_mapping entry as a dot-path into the nested `inputs`,
#  - explicit kwargs override routed entries,
#  - filter kwargs to the wrapped module's forward signature,
#  - positional args pass straight through.
# (Pure Python glue -- no Pallas equivalent needed or appropriate.)
# ----------------------------------------------------------------------------
def _get_tree_element(d, path):
    elem = d
    for p in path:
        elem = elem[p]
    return elem


class DataRouter:
    """JAX/Python port of ocl.utils.DataRouter (routing is glue, not compute)."""

    def __init__(self, module, input_mapping):
        self.module = module
        self.input_mapping = {
            key: value.split(".")
            for key, value in input_mapping.items()
            if value is not None
        }
        self._cached_valid_parameters = None

    def __call__(self, *args, inputs=None, **kwargs):
        if not inputs:
            inputs = {}
        # --- route_unfiltered: gather everything named in input_mapping ---
        if self.input_mapping:
            if not inputs:
                inputs = kwargs
            routed = {}
            for field, path in self.input_mapping.items():
                if field in kwargs:
                    continue
                routed[field] = _get_tree_element(inputs, path)
            for name, element in kwargs.items():
                routed[name] = element
            kwargs = routed
        # --- DataRouter.forward: filter to the wrapped module's signature ---
        if not self._cached_valid_parameters:
            try:
                signature = inspect.signature(self.module.forward)
            except AttributeError:
                if callable(self.module):
                    signature = inspect.signature(self.module.__call__)
                else:
                    signature = inspect.signature(self.module)
            self._cached_valid_parameters = list(signature.parameters)
        kwargs = {n: v for n, v in kwargs.items()
                  if n in self._cached_valid_parameters}
        return self.module(*args, **kwargs)


# ----------------------------------------------------------------------------
if __name__ == "__main__":
    key = jax.random.PRNGKey(0)
    k_p1, k_p2, k_x1, k_x2, k_x3, k_w3, k_b3 = jax.random.split(key, 7)

    # ---- 1) tiny problem through DataRouter: routing + small-problem fallback
    B1, S1, D1 = 2, 8, 32
    mod1 = PallasLinearModule(d_in=D1, d_out=D1, key=k_p1)
    x1 = jax.random.normal(k_x1, (B1, S1, D1), jnp.float32)
    nested1 = {"features": {"embedding": x1},
               "other": {"unused": jnp.zeros((1,), jnp.float32)}}
    router1 = DataRouter(mod1, input_mapping={"x": "features.embedding"})
    out1 = jax.block_until_ready(router1(inputs=nested1))
    assert out1.shape == (B1, S1, D1), out1.shape
    ref1 = (x1.reshape(-1, D1) @ mod1.weight.T + mod1.bias).reshape(B1, S1, D1)
    assert jnp.allclose(out1, ref1, atol=1e-5, rtol=1e-5), "tiny-path mismatch"

    # ---- 2) moderate problem through DataRouter: W-resident Pallas kernel ----
    B2, S2, D2 = 2, 64, 256
    mod2 = PallasLinearModule(d_in=D2, d_out=D2, key=k_p2)
    x2 = jax.random.normal(k_x2, (B2, S2, D2), jnp.float32)
    nested2 = {"features": {"embedding": x2}}
    router2 = DataRouter(mod2, input_mapping={"x": "features.embedding"})
    out2 = jax.block_until_ready(router2(inputs=nested2))
    assert out2.shape == (B2, S2, D2), out2.shape
    # Tight check vs a reference with identical bf16-operand / f32-accum numerics.
    x2_bf = x2.astype(jnp.bfloat16).astype(jnp.float32)
    w2_bf = mod2._w_p[:D2, :D2].astype(jnp.float32)          # [D_in, D_out]
    ref2_bf = jnp.einsum("bsd,do->bso", x2_bf, w2_bf,
                         precision=jax.lax.Precision.HIGHEST) + mod2.bias
    assert jnp.allclose(out2, ref2_bf, atol=2e-3, rtol=2e-3), "mismatch vs bf16 ref"
    # Looser semantic check vs the pure-f32 Linear (bf16 rounding only).
    ref2_f32 = jnp.einsum("bsd,od->bso", x2, mod2.weight) + mod2.bias
    assert jnp.allclose(out2, ref2_f32, atol=5e-2, rtol=5e-2), "mismatch vs f32 ref"

    # ---- 3) exercise the general tiled-reduction kernel (multi-step K) ------
    M3, K3, N3 = 128, 768, 256
    x3 = jax.random.normal(k_x3, (M3, K3), jnp.float32)
    w3 = (jax.random.normal(k_w3, (K3, N3), jnp.float32) * 0.05).astype(jnp.bfloat16)
    b3 = jax.random.normal(k_b3, (1, N3), jnp.float32)
    y3 = jax.block_until_ready(pallas_linear(x3, w3, b3, N3, force_tiled=True))
    ref3 = jnp.einsum("mk,kn->mn",
                      x3.astype(jnp.bfloat16).astype(jnp.float32),
                      w3.astype(jnp.float32),
                      precision=jax.lax.Precision.HIGHEST) + b3
    assert y3.shape == (M3, N3), y3.shape
    assert jnp.allclose(y3, ref3, atol=2e-3, rtol=2e-3), "tiled-path mismatch"

    print("KERNEL_OK")
</pallas_src>

<mosaic_0001>
module attributes {stable_mosaic.version = 11 : i64} {
  func.func @_linear_kernel_wres(%arg0: i32, %arg1: memref<128x256xbf16, #tpu.memory_space<vmem>>, %arg2: memref<256x256xbf16, #tpu.memory_space<vmem>>, %arg3: memref<1x256xf32, #tpu.memory_space<vmem>>, %arg4: memref<128x256xf32, #tpu.memory_space<vmem>>) attributes {dimension_semantics = [#tpu.dimension_semantics<parallel>], iteration_bounds = array<i64: 1>, scalar_prefetch = 0 : i64, scratch_operands = 0 : i64, tpu.core_type = #tpu.core_type<tc>, window_params = [{transform_indices = @transform_0, window_bounds = array<i64: 128, 256>}, {pipeline_mode = #tpu.pipeline_mode<synchronous>, transform_indices = @transform_1, window_bounds = array<i64: 256, 256>}, {pipeline_mode = #tpu.pipeline_mode<synchronous>, transform_indices = @transform_2, window_bounds = array<i64: 1, 256>}, {transform_indices = @transform_3, window_bounds = array<i64: 128, 256>}]} {
    %c0 = arith.constant 0 : index
    %c0_0 = arith.constant 0 : index
    %0 = vector.load %arg1[%c0, %c0_0] : memref<128x256xbf16, #tpu.memory_space<vmem>>, vector<128x256xbf16>
    %c0_1 = arith.constant 0 : index
    %c0_2 = arith.constant 0 : index
    %1 = vector.load %arg2[%c0_1, %c0_2] : memref<256x256xbf16, #tpu.memory_space<vmem>>, vector<256x256xbf16>
    %cst = arith.constant dense<0.000000e+00> : vector<128x256xf32>
    %2 = tpu.matmul %0, %1, %cst {dimension_numbers = #tpu.dot_dimension_numbers<[1], [0], [0], [1], [0, 0, 1, 1], [], []>} : vector<128x256xbf16>, vector<256x256xbf16>, vector<128x256xf32> -> vector<128x256xf32>
    %c0_3 = arith.constant 0 : index
    %c0_4 = arith.constant 0 : index
    %3 = vector.load %arg3[%c0_3, %c0_4] : memref<1x256xf32, #tpu.memory_space<vmem>>, vector<1x256xf32>
    %4 = vector.broadcast %3 : vector<1x256xf32> to vector<128x256xf32>
    %5 = arith.addf %2, %4 : vector<128x256xf32>
    %c0_5 = arith.constant 0 : index
    %c0_6 = arith.constant 0 : index
    %6 = vector.load %arg4[%c0_5, %c0_6] : memref<128x256xf32, #tpu.memory_space<vmem>>, vector<128x256xf32>
    tpu.vector_store %arg4[%c0_5, %c0_6], %5 {strides = array<i32>} : memref<128x256xf32, #tpu.memory_space<vmem>>, vector<128x256xf32>,
    return
  }
  func.func @transform_0(%arg0: i32) -> (i32, i32) {
    %c0_i32 = arith.constant 0 : i32
    %c0_i32_0 = arith.constant 0 : i32
    return %arg0, %c0_i32 : i32, i32
  }
  func.func @transform_1(%arg0: i32) -> (i32, i32) {
    %c0_i32 = arith.constant 0 : i32
    %c0_i32_0 = arith.constant 0 : i32
    %c0_i32_1 = arith.constant 0 : i32
    return %c0_i32, %c0_i32_0 : i32, i32
  }
  func.func @transform_2(%arg0: i32) -> (i32, i32) {
    %c0_i32 = arith.constant 0 : i32
    %c0_i32_0 = arith.constant 0 : i32
    %c0_i32_1 = arith.constant 0 : i32
    return %c0_i32, %c0_i32_0 : i32, i32
  }
  func.func @transform_3(%arg0: i32) -> (i32, i32) {
    %c0_i32 = arith.constant 0 : i32
    %c0_i32_0 = arith.constant 0 : i32
    return %arg0, %c0_i32 : i32, i32
  }
}

</mosaic_0001>

<llo_original>
// kernel: tpu_custom_call.1
$region0: #{tpu_custom_call.1}
  #allocation0 [shape = 'u32[]', space=smem, size = 0x4, offset = 0x4, fixed_abs, tag = 'smem constant byte address 0x4 - core index']
  #allocation1 [shape = 'u32[144,128]{1,0:T(1,128)}', space=vmem, size = 0x12000, scoped, tag = 'internal scratch']
  %s0 = inlined_call_operand.hbm [shape: bf16[128,256], index: 0, kind: input, shape index: {}]
  %s1 = inlined_call_operand.hbm [shape: bf16[256,256], index: 1, kind: input, shape index: {}]
  %s2 = inlined_call_operand.vmem [shape: f32[1,256], index: 2, kind: input, shape index: {}]
  %s3 = inlined_call_operand.hbm [shape: f32[128,256], index: 3, kind: output, shape index: {}]
  %s4 = sld [smem:[#allocation0]]
  $region30: #{tpu_custom_call.1} parent=0
    _
  %s6 = ssub.s32 1, %s4
  %s7 = scalar_select 0, %s6, %s4
  $region1: #{tpu_custom_call.1} parent=0
    #allocation2 [shape = 'u8[65536]{0}', space=vmem, size = 0x10000, scoped, tag = 'input window, operand 0, single buffered']
    #allocation3 [shape = 's32[1]{0}', space=sflag, size = 0x4, scoped, tag = 'scoped memory for tpu_custom_call.1']
    #allocation4 [shape = 's32[1]{0}', space=sflag, size = 0x4, scoped, tag = 'scoped memory for tpu_custom_call.1']
    #allocation5 [shape = 'u8[131072]{0}', space=vmem, size = 0x20000, scoped, tag = 'input window, operand 1, single buffered']
    #allocation6 [shape = 's32[1]{0}', space=sflag, size = 0x4, scoped, tag = 'scoped memory for tpu_custom_call.1']
    #allocation7 [shape = 'u8[131072]{0}', space=vmem, size = 0x20000, scoped, tag = 'output window, operand 0, single buffered']
    %8 = vsyncpa [#allocation3], 0
    %9 = vsyncpa [#allocation6], 0
    %10 = vsyncpa [#allocation4], 0
    // Predicated region
    $region2: #{tpu_custom_call.1} parent=1 // pred_check
      _
    $region3: #{tpu_custom_call.1} parent=1 // pred_check_branch
      %12 = sbr.rel (0) target = $region5
    $region4: #{tpu_custom_call.1} parent=1 // pred_region
      %s14 = ssub.s32 2048, 2048
      %15 = vsyncadd [#allocation3], %s14
      %s16 = sshll.u32 [#allocation2], 4
      %s17 = int_to_ptr.vmem [resolvable:$true] %s16
      %22 = dma.hbm_to_vmem [thread:$0]  %s0, 2048, %s17, [#allocation3], 128, 128, 8
    $region5: #{tpu_custom_call.1} parent=1 // pred_fallthru
      _
    // Predicated region
    $region6: #{tpu_custom_call.1} parent=1 // pred_check
      _
    $region7: #{tpu_custom_call.1} parent=1 // pred_check_branch
      %24 = sbr.rel (0) target = $region9
    $region8: #{tpu_custom_call.1} parent=1 // pred_region
      %s26 = ssub.s32 4096, 4096
      %27 = vsyncadd [#allocation6], %s26
      %s28 = sshll.u32 [#allocation5], 4
      %s29 = int_to_ptr.vmem [resolvable:$true] %s28
      %34 = dma.hbm_to_vmem [thread:$0]  %s1, 4096, %s29, [#allocation6], 128, 128, 8
    $region9: #{tpu_custom_call.1} parent=1 // pred_fallthru
      _
    // Predicated region
    $region10: #{tpu_custom_call.1} parent=1 // pred_check
      _
    $region11: #{tpu_custom_call.1} parent=1 // pred_check_branch
      %36 = sbr.rel (0) target = $region13
    $region12: #{tpu_custom_call.1} parent=1 // pred_region
      _
    $region13: #{tpu_custom_call.1} parent=1 // pred_fallthru
      _
    // Predicated region
    $region14: #{tpu_custom_call.1} parent=1 // pred_check
      _
    $region15: #{tpu_custom_call.1} parent=1 // pred_check_branch
      %38 = sbr.rel (0) target = $region17
    $region16: #{tpu_custom_call.1} parent=1 // pred_region
      %39 = dma.done [#allocation3], 2048
    $region17: #{tpu_custom_call.1} parent=1 // pred_fallthru
      _
    // Predicated region
    $region18: #{tpu_custom_call.1} parent=1 // pred_check
      _
    $region19: #{tpu_custom_call.1} parent=1 // pred_check_branch
      %41 = sbr.rel (0) target = $region21
    $region20: #{tpu_custom_call.1} parent=1 // pred_region
      %42 = dma.done [#allocation6], 4096
    $region21: #{tpu_custom_call.1} parent=1 // pred_fallthru
      _
    %v43 = vld [vmem:[#allocation2] sm:$0xff]
    %v44 = vld [vmem:[#allocation2 + $0x8] sm:$0xff]
    %v45 = vld [vmem:[#allocation2 + $0x10] sm:$0xff]
    %v46 = vld [vmem:[#allocation2 + $0x18] sm:$0xff]
    %v47 = vld [vmem:[#allocation2 + $0x20] sm:$0xff]
    %v48 = vld [vmem:[#allocation2 + $0x28] sm:$0xff]
    %v49 = vld [vmem:[#allocation2 + $0x30] sm:$0xff]
    %v50 = vld [vmem:[#allocation2 + $0x38] sm:$0xff]
    %v51 = vld [vmem:[#allocation2 + $0x40] sm:$0xff]
    %v52 = vld [vmem:[#allocation2 + $0x48] sm:$0xff]
    %v53 = vld [vmem:[#allocation2 + $0x50] sm:$0xff]
    %v54 = vld [vmem:[#allocation2 + $0x58] sm:$0xff]
    %v55 = vld [vmem:[#allocation2 + $0x60] sm:$0xff]
    %v56 = vld [vmem:[#allocation2 + $0x68] sm:$0xff]
    %v57 = vld [vmem:[#allocation2 + $0x70] sm:$0xff]
    %v58 = vld [vmem:[#allocation2 + $0x78] sm:$0xff]
    %v59 = vld [vmem:[#allocation5] sm:$0xff]
    %v60 = vld [vmem:[#allocation5 + $0x8] sm:$0xff]
    %v61 = vld [vmem:[#allocation5 + $0x10] sm:$0xff]
    %v62 = vld [vmem:[#allocation5 + $0x18] sm:$0xff]
    %v63 = vld [vmem:[#allocation5 + $0x20] sm:$0xff]
    %v64 = vld [vmem:[#allocation5 + $0x28] sm:$0xff]
    %v65 = vld [vmem:[#allocation5 + $0x30] sm:$0xff]
    %v66 = vld [vmem:[#allocation5 + $0x38] sm:$0xff]
    %v67 = vld [vmem:[#allocation5 + $0x40] sm:$0xff]
    %v68 = vld [vmem:[#allocation5 + $0x48] sm:$0xff]
    %v69 = vld [vmem:[#allocation5 + $0x50] sm:$0xff]
    %v70 = vld [vmem:[#allocation5 + $0x58] sm:$0xff]
    %v71 = vld [vmem:[#allocation5 + $0x60] sm:$0xff]
    %v72 = vld [vmem:[#allocation5 + $0x68] sm:$0xff]
    %v73 = vld [vmem:[#allocation5 + $0x70] sm:$0xff]
    %v74 = vld [vmem:[#allocation5 + $0x78] sm:$0xff]
    %v75 = vld [vmem:[#allocation5 + $0x80] sm:$0xff]
    %v76 = vld [vmem:[#allocation5 + $0x88] sm:$0xff]
    %v77 = vld [vmem:[#allocation5 + $0x90] sm:$0xff]
    %v78 = vld [vmem:[#allocation5 + $0x98] sm:$0xff]
    %v79 = vld [vmem:[#allocation5 + $0xa0] sm:$0xff]
    %v80 = vld [vmem:[#allocation5 + $0xa8] sm:$0xff]
    %v81 = vld [vmem:[#allocation5 + $0xb0] sm:$0xff]
    %v82 = vld [vmem:[#allocation5 + $0xb8] sm:$0xff]
    %v83 = vld [vmem:[#allocation5 + $0xc0] sm:$0xff]
    %v84 = vld [vmem:[#allocation5 + $0xc8] sm:$0xff]
    %v85 = vld [vmem:[#allocation5 + $0xd0] sm:$0xff]
    %v86 = vld [vmem:[#allocation5 + $0xd8] sm:$0xff]
    %v87 = vld [vmem:[#allocation5 + $0xe0] sm:$0xff]
    %v88 = vld [vmem:[#allocation5 + $0xe8] sm:$0xff]
    %v89 = vld [vmem:[#allocation5 + $0xf0] sm:$0xff]
    %v90 = vld [vmem:[#allocation5 + $0xf8] sm:$0xff]
    %v91 = vld [vmem:[%s2] sm:$0x3]
    %v93 = vlaneseq
    %v94 = vshrl.u32 %v93, 7
    %v95 = vsub.s32 0, %v94
    %v96 = vrot.slane %v91, %v95
    %v97 = vlaneseq
    %v98 = vshrl.u32 %v97, 7
    %v99 = vsub.s32 1, %v98
    %v100 = vrot.slane %v91, %v99
    %v119 = vunpack.c.l.b16 %v43
    %v120 = vunpack.c.h.b16 %v43
    %v121 = vunpack.c.l.b16 %v44
    %v122 = vunpack.c.h.b16 %v44
    %v123 = vunpack.c.l.b16 %v45
    %v124 = vunpack.c.h.b16 %v45
    %v125 = vunpack.c.l.b16 %v46
    %v126 = vunpack.c.h.b16 %v46
    %v127 = vunpack.c.l.b16 %v47
    %v128 = vunpack.c.h.b16 %v47
    %v129 = vunpack.c.l.b16 %v48
    %v130 = vunpack.c.h.b16 %v48
    %v131 = vunpack.c.l.b16 %v49
    %v132 = vunpack.c.h.b16 %v49
    %v133 = vunpack.c.l.b16 %v50
    %v134 = vunpack.c.h.b16 %v50
    %v135 = vunpack.c.l.b16 %v51
    %v136 = vunpack.c.h.b16 %v51
    %v137 = vunpack.c.l.b16 %v52
    %v138 = vunpack.c.h.b16 %v52
    %v139 = vunpack.c.l.b16 %v53
    %v140 = vunpack.c.h.b16 %v53
    %v141 = vunpack.c.l.b16 %v54
    %v142 = vunpack.c.h.b16 %v54
    %v143 = vunpack.c.l.b16 %v55
    %v144 = vunpack.c.h.b16 %v55
    %v145 = vunpack.c.l.b16 %v56
    %v146 = vunpack.c.h.b16 %v56
    %v147 = vunpack.c.l.b16 %v57
    %v148 = vunpack.c.h.b16 %v57
    %v149 = vunpack.c.l.b16 %v58
    %v150 = vunpack.c.h.b16 %v58
    %v151 = vpack.c.b16 %v121, %v119
    %v152 = vpack.c.b16 %v122, %v120
    %v153 = vpack.c.b16 %v125, %v123
    %v154 = vpack.c.b16 %v126, %v124
    %v155 = vpack.c.b16 %v129, %v127
    %v156 = vpack.c.b16 %v130, %v128
    %v157 = vpack.c.b16 %v133, %v131
    %v158 = vpack.c.b16 %v134, %v132
    %v159 = vpack.c.b16 %v137, %v135
    %v160 = vpack.c.b16 %v138, %v136
    %v161 = vpack.c.b16 %v141, %v139
    %v162 = vpack.c.b16 %v142, %v140
    %v163 = vpack.c.b16 %v145, %v143
    %v164 = vpack.c.b16 %v146, %v144
    %v165 = vpack.c.b16 %v149, %v147
    %v166 = vpack.c.b16 %v150, %v148
    %v215 = vunpack.c.l.b16 %v59
    %v216 = vunpack.c.h.b16 %v59
    %v217 = vunpack.c.l.b16 %v60
    %v218 = vunpack.c.h.b16 %v60
    %v219 = vunpack.c.l.b16 %v61
    %v220 = vunpack.c.h.b16 %v61
    %v221 = vunpack.c.l.b16 %v62
    %v222 = vunpack.c.h.b16 %v62
    %v223 = vunpack.c.l.b16 %v63
    %v224 = vunpack.c.h.b16 %v63
    %v225 = vunpack.c.l.b16 %v64
    %v226 = vunpack.c.h.b16 %v64
    %v227 = vunpack.c.l.b16 %v65
    %v228 = vunpack.c.h.b16 %v65
    %v229 = vunpack.c.l.b16 %v66
    %v230 = vunpack.c.h.b16 %v66
    %v231 = vunpack.c.l.b16 %v67
    %v232 = vunpack.c.h.b16 %v67
    %v233 = vunpack.c.l.b16 %v68
    %v234 = vunpack.c.h.b16 %v68
    %v235 = vunpack.c.l.b16 %v69
    %v236 = vunpack.c.h.b16 %v69
    %v237 = vunpack.c.l.b16 %v70
    %v238 = vunpack.c.h.b16 %v70
    %v239 = vunpack.c.l.b16 %v71
    %v240 = vunpack.c.h.b16 %v71
    %v241 = vunpack.c.l.b16 %v72
    %v242 = vunpack.c.h.b16 %v72
    %v243 = vunpack.c.l.b16 %v73
    %v244 = vunpack.c.h.b16 %v73
    %v245 = vunpack.c.l.b16 %v74
    %v246 = vunpack.c.h.b16 %v74
    %v247 = vunpack.c.l.b16 %v75
    %v248 = vunpack.c.h.b16 %v75
    %v249 = vunpack.c.l.b16 %v76
    %v250 = vunpack.c.h.b16 %v76
    %v251 = vunpack.c.l.b16 %v77
    %v252 = vunpack.c.h.b16 %v77
    %v253 = vunpack.c.l.b16 %v78
    %v254 = vunpack.c.h.b16 %v78
    %v255 = vunpack.c.l.b16 %v79
    %v256 = vunpack.c.h.b16 %v79
    %v257 = vunpack.c.l.b16 %v80
    %v258 = vunpack.c.h.b16 %v80
    %v259 = vunpack.c.l.b16 %v81
    %v260 = vunpack.c.h.b16 %v81
    %v261 = vunpack.c.l.b16 %v82
    %v262 = vunpack.c.h.b16 %v82
    %v263 = vunpack.c.l.b16 %v83
    %v264 = vunpack.c.h.b16 %v83
    %v265 = vunpack.c.l.b16 %v84
    %v266 = vunpack.c.h.b16 %v84
    %v267 = vunpack.c.l.b16 %v85
    %v268 = vunpack.c.h.b16 %v85
    %v269 = vunpack.c.l.b16 %v86
    %v270 = vunpack.c.h.b16 %v86
    %v271 = vunpack.c.l.b16 %v87
    %v272 = vunpack.c.h.b16 %v87
    %v273 = vunpack.c.l.b16 %v88
    %v274 = vunpack.c.h.b16 %v88
    %v275 = vunpack.c.l.b16 %v89
    %v276 = vunpack.c.h.b16 %v89
    %v277 = vunpack.c.l.b16 %v90
    %v278 = vunpack.c.h.b16 %v90
    %v279 = vpack.c.b16 %v217, %v215
    %v280 = vpack.c.b16 %v218, %v216
    %v281 = vpack.c.b16 %v221, %v219
    %v282 = vpack.c.b16 %v222, %v220
    %v283 = vpack.c.b16 %v225, %v223
    %v284 = vpack.c.b16 %v226, %v224
    %v285 = vpack.c.b16 %v229, %v227
    %v286 = vpack.c.b16 %v230, %v228
    %v287 = vpack.c.b16 %v233, %v231
    %v288 = vpack.c.b16 %v234, %v232
    %v289 = vpack.c.b16 %v237, %v235
    %v290 = vpack.c.b16 %v238, %v236
    %v291 = vpack.c.b16 %v241, %v239
    %v292 = vpack.c.b16 %v242, %v240
    %v293 = vpack.c.b16 %v245, %v243
    %v294 = vpack.c.b16 %v246, %v244
    %v295 = vpack.c.b16 %v249, %v247
    %v296 = vpack.c.b16 %v250, %v248
    %v297 = vpack.c.b16 %v253, %v251
    %v298 = vpack.c.b16 %v254, %v252
    %v299 = vpack.c.b16 %v257, %v255
    %v300 = vpack.c.b16 %v258, %v256
    %v301 = vpack.c.b16 %v261, %v259
    %v302 = vpack.c.b16 %v262, %v260
    %v303 = vpack.c.b16 %v265, %v263
    %v304 = vpack.c.b16 %v266, %v264
    %v305 = vpack.c.b16 %v269, %v267
    %v306 = vpack.c.b16 %v270, %v268
    %v307 = vpack.c.b16 %v273, %v271
    %v308 = vpack.c.b16 %v274, %v272
    %v309 = vpack.c.b16 %v277, %v275
    %v310 = vpack.c.b16 %v278, %v276
    %343 = vmatprep.subr.bf16.mxu0 %v280
    %344 = vmatpush1.bf16.msra.mxu0 %v279
    %345 = vmatprep.subr.bf16.mxu0 %v282
    %346 = vmatpush1.bf16.msra.mxu0 %v281
    %347 = vmatprep.subr.bf16.mxu0 %v284
    %348 = vmatpush1.bf16.msra.mxu0 %v283
    %349 = vmatprep.subr.bf16.mxu0 %v286
    %350 = vmatpush1.bf16.msra.mxu0 %v285
    %351 = vmatprep.subr.bf16.mxu0 %v288
    %352 = vmatpush1.bf16.msra.mxu0 %v287
    %353 = vmatprep.subr.bf16.mxu0 %v290
    %354 = vmatpush1.bf16.msra.mxu0 %v289
    %355 = vmatprep.subr.bf16.mxu0 %v292
    %356 = vmatpush1.bf16.msra.mxu0 %v291
    %357 = vmatprep.subr.bf16.mxu0 %v294
    %358 = vmatpush1.bf16.msra.mxu0 %v293
    %359 = vmatprep.subr.bf16.mxu0 %v296
    %360 = vmatpush1.bf16.msra.mxu0 %v295
    %361 = vmatprep.subr.bf16.mxu0 %v298
    %362 = vmatpush1.bf16.msra.mxu0 %v297
    %363 = vmatprep.subr.bf16.mxu0 %v300
    %364 = vmatpush1.bf16.msra.mxu0 %v299
    %365 = vmatprep.subr.bf16.mxu0 %v302
    %366 = vmatpush1.bf16.msra.mxu0 %v301
    %367 = vmatprep.subr.bf16.mxu0 %v304
    %368 = vmatpush1.bf16.msra.mxu0 %v303
    %369 = vmatprep.subr.bf16.mxu0 %v306
    %370 = vmatpush1.bf16.msra.mxu0 %v305
    %371 = vmatprep.subr.bf16.mxu0 %v308
    %372 = vmatpush1.bf16.msra.mxu0 %v307
    %373 = vmatprep.subr.bf16.mxu0 %v310
    %374 = vmatpush1.bf16.msra.mxu0 %v309
    %375 = vmatprep.mubr.bf16.mxu0 %v152
    %376 = vmatmul.mubr.bf16.gmra.mrb[0].mxu0 %v151
    %v377 = vpop.f32.mrb[0].mxu0
    %v378 = vadd.f32 %v96, %v377
    %v379 = vpop.f32.mrb[0].mxu0
    %v380 = vadd.f32 %v100, %v379
    %v381 = vpop.f32.mrb[0].mxu0
    %v382 = vadd.f32 %v96, %v381
    %v383 = vpop.f32.mrb[0].mxu0
    %v384 = vadd.f32 %v100, %v383
    %385 = vmatprep.mubr.bf16.mxu0 %v154
    %386 = vmatmul.mubr.bf16.gmra.mrb[0].mxu0 %v153
    %v387 = vpop.f32.mrb[0].mxu0
    %v388 = vadd.f32 %v96, %v387
    %v389 = vpop.f32.mrb[0].mxu0
    %v390 = vadd.f32 %v100, %v389
    %v391 = vpop.f32.mrb[0].mxu0
    %v392 = vadd.f32 %v96, %v391
    %v393 = vpop.f32.mrb[0].mxu0
    %v394 = vadd.f32 %v100, %v393
    %395 = vmatprep.mubr.bf16.mxu0 %v156
    %396 = vmatmul.mubr.bf16.gmra.mrb[0].mxu0 %v155
    %v397 = vpop.f32.mrb[0].mxu0
    %v398 = vadd.f32 %v96, %v397
    %v399 = vpop.f32.mrb[0].mxu0
    %v400 = vadd.f32 %v100, %v399
    %v401 = vpop.f32.mrb[0].mxu0
    %v402 = vadd.f32 %v96, %v401
    %v403 = vpop.f32.mrb[0].mxu0
    %v404 = vadd.f32 %v100, %v403
    %405 = vmatprep.mubr.bf16.mxu0 %v158
    %406 = vmatmul.mubr.bf16.gmra.mrb[0].mxu0 %v157
    %v407 = vpop.f32.mrb[0].mxu0
    %v408 = vadd.f32 %v96, %v407
    %v409 = vpop.f32.mrb[0].mxu0
    %v410 = vadd.f32 %v100, %v409
    %v411 = vpop.f32.mrb[0].mxu0
    %v412 = vadd.f32 %v96, %v411
    %v413 = vpop.f32.mrb[0].mxu0
    %v414 = vadd.f32 %v100, %v413
    %415 = vmatprep.mubr.bf16.mxu0 %v160
    %416 = vmatmul.mubr.bf16.gmra.mrb[0].mxu0 %v159
    %v417 = vpop.f32.mrb[0].mxu0
    %v418 = vadd.f32 %v96, %v417
    %v419 = vpop.f32.mrb[0].mxu0
    %v420 = vadd.f32 %v100, %v419
    %v421 = vpop.f32.mrb[0].mxu0
    %v422 = vadd.f32 %v96, %v421
    %v423 = vpop.f32.mrb[0].mxu0
    %v424 = vadd.f32 %v100, %v423
    %425 = vmatprep.mubr.bf16.mxu0 %v162
    %426 = vmatmul.mubr.bf16.gmra.mrb[0].mxu0 %v161
    %v427 = vpop.f32.mrb[0].mxu0
    %v428 = vadd.f32 %v96, %v427
    %v429 = vpop.f32.mrb[0].mxu0
    %v430 = vadd.f32 %v100, %v429
    %v431 = vpop.f32.mrb[0].mxu0
    %v432 = vadd.f32 %v96, %v431
    %v433 = vpop.f32.mrb[0].mxu0
    %v434 = vadd.f32 %v100, %v433
    %435 = vmatprep.mubr.bf16.mxu0 %v164
    %436 = vmatmul.mubr.bf16.gmra.mrb[0].mxu0 %v163
    %v437 = vpop.f32.mrb[0].mxu0
    %v438 = vadd.f32 %v96, %v437
    %v439 = vpop.f32.mrb[0].mxu0
    %v440 = vadd.f32 %v100, %v439
    %v441 = vpop.f32.mrb[0].mxu0
    %v442 = vadd.f32 %v96, %v441
    %v443 = vpop.f32.mrb[0].mxu0
    %v444 = vadd.f32 %v100, %v443
    %445 = vmatprep.mubr.bf16.mxu0 %v166
    %446 = vmatmul.mubr.bf16.gmra.mrb[0].mxu0 %v165
    %v447 = vpop.f32.mrb[0].mxu0
    %v448 = vadd.f32 %v96, %v447
    %v449 = vpop.f32.mrb[0].mxu0
    %v450 = vadd.f32 %v100, %v449
    %v451 = vpop.f32.mrb[0].mxu0
    %v452 = vadd.f32 %v96, %v451
    %v453 = vpop.f32.mrb[0].mxu0
    %v454 = vadd.f32 %v100, %v453
    %455 = vdwg.mxu0
    %456 = vst [vmem:[#allocation7] sm:$0xff] %v378
    %457 = vst [vmem:[#allocation7 + $0x8] sm:$0xff] %v380
    %458 = vst [vmem:[#allocation7 + $0x10] sm:$0xff] %v382
    %459 = vst [vmem:[#allocation7 + $0x18] sm:$0xff] %v384
    %460 = vst [vmem:[#allocation7 + $0x20] sm:$0xff] %v388
    %461 = vst [vmem:[#allocation7 + $0x28] sm:$0xff] %v390
    %462 = vst [vmem:[#allocation7 + $0x30] sm:$0xff] %v392
    %463 = vst [vmem:[#allocation7 + $0x38] sm:$0xff] %v394
    %464 = vst [vmem:[#allocation7 + $0x40] sm:$0xff] %v398
    %465 = vst [vmem:[#allocation7 + $0x48] sm:$0xff] %v400
    %466 = vst [vmem:[#allocation7 + $0x50] sm:$0xff] %v402
    %467 = vst [vmem:[#allocation7 + $0x58] sm:$0xff] %v404
    %468 = vst [vmem:[#allocation7 + $0x60] sm:$0xff] %v408
    %469 = vst [vmem:[#allocation7 + $0x68] sm:$0xff] %v410
    %470 = vst [vmem:[#allocation7 + $0x70] sm:$0xff] %v412
    %471 = vst [vmem:[#allocation7 + $0x78] sm:$0xff] %v414
    %472 = vst [vmem:[#allocation7 + $0x80] sm:$0xff] %v418
    %473 = vst [vmem:[#allocation7 + $0x88] sm:$0xff] %v420
    %474 = vst [vmem:[#allocation7 + $0x90] sm:$0xff] %v422
    %475 = vst [vmem:[#allocation7 + $0x98] sm:$0xff] %v424
    %476 = vst [vmem:[#allocation7 + $0xa0] sm:$0xff] %v428
    %477 = vst [vmem:[#allocation7 + $0xa8] sm:$0xff] %v430
    %478 = vst [vmem:[#allocation7 + $0xb0] sm:$0xff] %v432
    %479 = vst [vmem:[#allocation7 + $0xb8] sm:$0xff] %v434
    %480 = vst [vmem:[#allocation7 + $0xc0] sm:$0xff] %v438
    %481 = vst [vmem:[#allocation7 + $0xc8] sm:$0xff] %v440
    %482 = vst [vmem:[#allocation7 + $0xd0] sm:$0xff] %v442
    %483 = vst [vmem:[#allocation7 + $0xd8] sm:$0xff] %v444
    %484 = vst [vmem:[#allocation7 + $0xe0] sm:$0xff] %v448
    %485 = vst [vmem:[#allocation7 + $0xe8] sm:$0xff] %v450
    %486 = vst [vmem:[#allocation7 + $0xf0] sm:$0xff] %v452
    %487 = vst [vmem:[#allocation7 + $0xf8] sm:$0xff] %v454
    // Predicated region
    $region22: #{tpu_custom_call.1} parent=1 // pred_check
      _
    $region23: #{tpu_custom_call.1} parent=1 // pred_check_branch
      %489 = sbr.rel (0) target = $region25
    $region24: #{tpu_custom_call.1} parent=1 // pred_region
      %s491 = ssub.s32 4096, 4096
      %492 = vsyncadd [#allocation4], %s491
      %s493 = sshll.u32 [#allocation7], 4
      %s494 = int_to_ptr.vmem [resolvable:$true] %s493
      %499 = dma.vmem_to_hbm [thread:$0]  %s494, 4096, %s3, [#allocation4], 256, 256, 16
    $region25: #{tpu_custom_call.1} parent=1 // pred_fallthru
      _
    // Predicated region
    $region26: #{tpu_custom_call.1} parent=1 // pred_check
      _
    $region27: #{tpu_custom_call.1} parent=1 // pred_check_branch
      %501 = sbr.rel (0) target = $region29
    $region28: #{tpu_custom_call.1} parent=1 // pred_region
      %502 = dma.done [#allocation4], 4096
    $region29: #{tpu_custom_call.1} parent=1 // pred_fallthru
      _
    %503 = vsyncpa [#allocation3], 1
    %504 = vsyncpa [#allocation6], 1
    %505 = vsyncpa [#allocation4], 1

</llo_original>
